<compile_context>
chip_gen: v5e
topology: v5e:2x2
jax: 0.10.0
libtpu: 0.0.40
codegen_flags: <defaults>
</compile_context>

<pallas_src>
import math

import jax
import jax.numpy as jnp
from jax.experimental import pallas as pl
from jax.experimental.pallas import tpu as pltpu  # noqa: F401  (kept for TPU-specific knobs)


def _inv_decoder_kernel(x_ref, w_ref, b_ref, out_ref):
    """Single invocation: fused block-diagonal matmul for ALL inventory keys.

    x_ref  : (B, num_keys*h_dim)          activations (f32 or bf16)
    w_ref  : (num_keys*h_dim, n_pad)      block-diagonal packed weight
    b_ref  : (1, n_pad)                   concatenated zero-padded biases (f32)
    out_ref: (B, n_pad)                   all per-key logits, lane-dense
    """
    y = jnp.dot(x_ref[...], w_ref[...], preferred_element_type=jnp.float32)
    out_ref[...] = (y + b_ref[...]).astype(out_ref.dtype)


def pack_inventory_decoder_params(params, inv_shapes, h_dim,
                                  compute_dtype=jnp.float32):
    """One-time parameter packing (call at init, NOT per forward).

    Builds a block-diagonal weight so that
        x[:, k*h_dim:(k+1)*h_dim] @ W_k  ==  (x @ W_packed)[:, off_k:off_k+od_k]
    Only the total output width is padded (to a multiple of 128) so small
    heads don't burn extra MXU columns or writeback bytes.
    """
    keys = list(inv_shapes.keys())
    num_keys = len(keys)
    out_dims = [inv_shapes[k][0] * int(math.prod(inv_shapes[k][1])) for k in keys]
    offsets = []
    acc = 0
    for od in out_dims:
        offsets.append(acc)
        acc += od
    n_total = acc
    n_pad = max(128, ((n_total + 127) // 128) * 128)
    k_total = num_keys * h_dim

    w_packed = jnp.zeros((k_total, n_pad), dtype=jnp.float32)
    b_packed = jnp.zeros((1, n_pad), dtype=jnp.float32)
    for i, k in enumerate(keys):
        od, off = out_dims[i], offsets[i]
        w_packed = w_packed.at[i * h_dim:(i + 1) * h_dim, off:off + od].set(
            params[k]["w"])
        b_packed = b_packed.at[0, off:off + od].set(params[k]["b"])

    return {
        "w": w_packed.astype(compute_dtype),   # MXU operand dtype
        "b": b_packed,                          # bias add stays f32 (v5e-safe)
        "keys": tuple(keys),
        "out_dims": tuple(out_dims),
        "offsets": tuple(offsets),
        "n_pad": n_pad,
        "k_total": k_total,
        "compute_dtype": compute_dtype,
    }


def inventory_decoder_forward(x, packed, inv_shapes):
    """x: [B, num_keys*h_dim]; returns dict of [B, num_classes, *shape]."""
    B = x.shape[0]
    k_total = packed["k_total"]
    n_pad = packed["n_pad"]
    assert x.shape[1] == k_total, (x.shape, k_total)

    x_c = x.astype(packed["compute_dtype"])

    out = pl.pallas_call(
        _inv_decoder_kernel,
        out_shape=jax.ShapeDtypeStruct((B, n_pad), jnp.float32),
        # No grid: one step, whole problem resident in VMEM (a few hundred KB).
        in_specs=[
            pl.BlockSpec((B, k_total), lambda: (0, 0)),
            pl.BlockSpec((k_total, n_pad), lambda: (0, 0)),
            pl.BlockSpec((1, n_pad), lambda: (0, 0)),
        ],
        out_specs=pl.BlockSpec((B, n_pad), lambda: (0, 0)),
    )(x_c, packed["w"], packed["b"])

    # Wrapper glue only: per-key slice + reshape (views, no compute).
    outputs = {}
    for key, od, off in zip(packed["keys"], packed["out_dims"], packed["offsets"]):
        nc, shape = inv_shapes[key]
        outputs[key] = out[:, off:off + od].reshape(B, nc, *shape)
    return outputs


def _reference_forward(x, params, inv_shapes, h_dim):
    """Pure-JAX reference (matches PyTorch InventoryDecoder semantics)."""
    outputs = {}
    B = x.shape[0]
    for i, (key, (nc, shape)) in enumerate(inv_shapes.items()):
        xk = x[:, i * h_dim:(i + 1) * h_dim]
        logits = xk @ params[key]["w"] + params[key]["b"]
        outputs[key] = logits.reshape(B, nc, *shape)
    return outputs


def init_params(key, inv_shapes, h_dim):
    params = {}
    ks = jax.random.split(key, 2 * len(inv_shapes))
    scale = 1.0 / jnp.sqrt(jnp.float32(h_dim))
    for i, (name, (nc, shape)) in enumerate(inv_shapes.items()):
        od = int(math.prod(shape)) * nc
        params[name] = {
            # Stored as (h_dim, od): the transpose of nn.Linear's (od, h_dim).
            "w": jax.random.normal(ks[2 * i], (h_dim, od), jnp.float32) * scale,
            "b": jax.random.normal(ks[2 * i + 1], (od,), jnp.float32) * 0.01,
        }
    return params


if __name__ == "__main__":
    # Small shapes consistent with the module: a few NetHack inventory heads.
    B, H_DIM = 2, 32
    inv_shapes = {
        "inv_glyphs":   (16, (8,)),    # 128 logits
        "inv_letters":  (8,  (8,)),    # 64 logits
        "inv_oclasses": (4,  (8,)),    # 32 logits
        "inv_strs":     (6,  (8, 4)),  # 192 logits  -> total 416, padded to 512
    }
    num_keys = len(inv_shapes)

    key = jax.random.PRNGKey(0)
    k_param, k_x = jax.random.split(key)
    params = init_params(k_param, inv_shapes, H_DIM)
    x = jax.random.normal(k_x, (B, num_keys * H_DIM), jnp.float32)

    # One-time packing (off the forward critical path).
    # For v6e/v7x throughput, pass compute_dtype=jnp.bfloat16 here.
    packed = pack_inventory_decoder_params(params, inv_shapes, H_DIM,
                                           compute_dtype=jnp.float32)
    packed = jax.block_until_ready(packed)

    out = inventory_decoder_forward(x, packed, inv_shapes)
    out = jax.block_until_ready(out)

    ref = jax.block_until_ready(_reference_forward(x, params, inv_shapes, H_DIM))
    for name, (nc, shape) in inv_shapes.items():
        assert out[name].shape == (B, nc) + tuple(shape), (name, out[name].shape)
        assert jnp.allclose(out[name], ref[name], atol=1e-4, rtol=1e-4), (
            name, float(jnp.max(jnp.abs(out[name] - ref[name]))))

    print("KERNEL_OK")
</pallas_src>

<mosaic_0001>
module attributes {stable_mosaic.version = 11 : i64} {
  func.func @_inv_decoder_kernel(%arg0: memref<2x128xf32, #tpu.memory_space<vmem>>, %arg1: memref<128x512xf32, #tpu.memory_space<vmem>>, %arg2: memref<1x512xf32, #tpu.memory_space<vmem>>, %arg3: memref<2x512xf32, #tpu.memory_space<vmem>>) attributes {dimension_semantics = [], scalar_prefetch = 0 : i64, scratch_operands = 0 : i64, tpu.core_type = #tpu.core_type<tc>} {
    %c0 = arith.constant 0 : index
    %c0_0 = arith.constant 0 : index
    %0 = vector.load %arg0[%c0, %c0_0] : memref<2x128xf32, #tpu.memory_space<vmem>>, vector<2x128xf32>
    %c0_1 = arith.constant 0 : index
    %c0_2 = arith.constant 0 : index
    %1 = vector.load %arg1[%c0_1, %c0_2] : memref<128x512xf32, #tpu.memory_space<vmem>>, vector<128x512xf32>
    %cst = arith.constant dense<0.000000e+00> : vector<2x512xf32>
    %2 = tpu.matmul %0, %1, %cst {dimension_numbers = #tpu.dot_dimension_numbers<[1], [0], [0], [1], [0, 0, 1, 1], [], []>} : vector<2x128xf32>, vector<128x512xf32>, vector<2x512xf32> -> vector<2x512xf32>
    %c0_3 = arith.constant 0 : index
    %c0_4 = arith.constant 0 : index
    %3 = vector.load %arg2[%c0_3, %c0_4] : memref<1x512xf32, #tpu.memory_space<vmem>>, vector<1x512xf32>
    %4 = vector.broadcast %3 : vector<1x512xf32> to vector<2x512xf32>
    %5 = arith.addf %2, %4 : vector<2x512xf32>
    %c0_5 = arith.constant 0 : index
    %c0_6 = arith.constant 0 : index
    %6 = vector.load %arg3[%c0_5, %c0_6] : memref<2x512xf32, #tpu.memory_space<vmem>>, vector<2x512xf32>
    tpu.vector_store %arg3[%c0_5, %c0_6], %5 {strides = array<i32>} : memref<2x512xf32, #tpu.memory_space<vmem>>, vector<2x512xf32>,
    return
  }
}

</mosaic_0001>

<llo_original>
// kernel: tpu_custom_call.1
$region0: #{tpu_custom_call.1}
  #allocation0 [shape = 'u32[]', space=smem, size = 0x4, offset = 0x4, fixed_abs, tag = 'smem constant byte address 0x4 - core index']
  #allocation1 [shape = 'u32[72,128]{1,0:T(1,128)}', space=vmem, size = 0x9000, scoped, tag = 'internal scratch']
  %s0 = inlined_call_operand.hbm [shape: f32[2,128], index: 0, kind: input, shape index: {}]
  %s1 = inlined_call_operand.hbm [shape: f32[128,512], index: 1, kind: input, shape index: {}]
  %s2 = inlined_call_operand.hbm [shape: f32[1,512], index: 2, kind: input, shape index: {}]
  %s3 = inlined_call_operand.hbm [shape: f32[2,512], index: 3, kind: output, shape index: {}]
  %s4 = sld [smem:[#allocation0]]
  $region34: #{tpu_custom_call.1} parent=0
    _
  %s6 = ssub.s32 1, %s4
  %s7 = scalar_select 0, %s6, %s4
  $region1: #{tpu_custom_call.1} parent=0
    #allocation2 [shape = 'u8[1024]{0}', space=vmem, size = 0x400, scoped, tag = 'input window, operand 0, single buffered']
    #allocation3 [shape = 's32[1]{0}', space=sflag, size = 0x4, scoped, tag = 'scoped memory for tpu_custom_call.1']
    #allocation4 [shape = 's32[1]{0}', space=sflag, size = 0x4, scoped, tag = 'scoped memory for tpu_custom_call.1']
    #allocation5 [shape = 'u8[262144]{0}', space=vmem, size = 0x40000, scoped, tag = 'input window, operand 1, single buffered']
    #allocation6 [shape = 's32[1]{0}', space=sflag, size = 0x4, scoped, tag = 'scoped memory for tpu_custom_call.1']
    #allocation7 [shape = 'u8[2048]{0}', space=vmem, size = 0x800, scoped, tag = 'input window, operand 2, single buffered']
    #allocation8 [shape = 'u8[4096]{0}', space=vmem, size = 0x1000, scoped, tag = 'output window, operand 0, single buffered']
    %8 = vsyncpa [#allocation3], 0
    %9 = vsyncpa [#allocation6], 0
    %10 = vsyncpa [#allocation4], 0
    // Predicated region
    $region2: #{tpu_custom_call.1} parent=1 // pred_check
      _
    $region3: #{tpu_custom_call.1} parent=1 // pred_check_branch
      %12 = sbr.rel (0) target = $region5
    $region4: #{tpu_custom_call.1} parent=1 // pred_region
      %14 = vsyncadd [#allocation3], 0
      %s16 = sshll.u32 %s0, 4
      %s17 = int_to_ptr.hbm [resolvable:$true] %s16
      %s18 = sshll.u32 [#allocation2], 4
      %s19 = int_to_ptr.vmem [resolvable:$true] %s18
      %21 = dma.hbm_to_vmem [thread:$0]  %s17, 32, %s19, [#allocation3]
    $region5: #{tpu_custom_call.1} parent=1 // pred_fallthru
      _
    // Predicated region
    $region6: #{tpu_custom_call.1} parent=1 // pred_check
      _
    $region7: #{tpu_custom_call.1} parent=1 // pred_check_branch
      %23 = sbr.rel (0) target = $region9
    $region8: #{tpu_custom_call.1} parent=1 // pred_region
      %25 = vsyncadd [#allocation6], 0
      %s26 = sshll.u32 %s1, 4
      %s27 = int_to_ptr.hbm [resolvable:$true] %s26
      %s28 = sshll.u32 [#allocation5], 4
      %s29 = int_to_ptr.vmem [resolvable:$true] %s28
      %34 = dma.hbm_to_vmem [thread:$0]  %s27, 8192, %s29, [#allocation6], 512, 512, 32
    $region9: #{tpu_custom_call.1} parent=1 // pred_fallthru
      _
    // Predicated region
    $region10: #{tpu_custom_call.1} parent=1 // pred_check
      _
    $region11: #{tpu_custom_call.1} parent=1 // pred_check_branch
      %36 = sbr.rel (0) target = $region13
    $region12: #{tpu_custom_call.1} parent=1 // pred_region
      %38 = vsyncadd [#allocation6], 0
      %s40 = sshll.u32 %s2, 4
      %s41 = int_to_ptr.hbm [resolvable:$true] %s40
      %s42 = sshll.u32 [#allocation7], 4
      %s43 = int_to_ptr.vmem [resolvable:$true] %s42
      %45 = dma.hbm_to_vmem [thread:$0]  %s41, 64, %s43, [#allocation6]
    $region13: #{tpu_custom_call.1} parent=1 // pred_fallthru
      _
    // Predicated region
    $region14: #{tpu_custom_call.1} parent=1 // pred_check
      _
    $region15: #{tpu_custom_call.1} parent=1 // pred_check_branch
      %47 = sbr.rel (0) target = $region17
    $region16: #{tpu_custom_call.1} parent=1 // pred_region
      %49 = dma.done [#allocation3], 32
    $region17: #{tpu_custom_call.1} parent=1 // pred_fallthru
      _
    // Predicated region
    $region18: #{tpu_custom_call.1} parent=1 // pred_check
      _
    $region19: #{tpu_custom_call.1} parent=1 // pred_check_branch
      %51 = sbr.rel (0) target = $region21
    $region20: #{tpu_custom_call.1} parent=1 // pred_region
      %53 = dma.done [#allocation6], 8192
    $region21: #{tpu_custom_call.1} parent=1 // pred_fallthru
      _
    // Predicated region
    $region22: #{tpu_custom_call.1} parent=1 // pred_check
      _
    $region23: #{tpu_custom_call.1} parent=1 // pred_check_branch
      %55 = sbr.rel (0) target = $region25
    $region24: #{tpu_custom_call.1} parent=1 // pred_region
      %57 = dma.done [#allocation6], 64
    $region25: #{tpu_custom_call.1} parent=1 // pred_fallthru
      _
    %v58 = vld [vmem:[#allocation2] sm:$0x3]
    %v59 = vld [vmem:[#allocation5] sm:$0xff]
    %v60 = vld [vmem:[#allocation5 + $0x8] sm:$0xff]
    %v61 = vld [vmem:[#allocation5 + $0x10] sm:$0xff]
    %v62 = vld [vmem:[#allocation5 + $0x18] sm:$0xff]
    %v63 = vld [vmem:[#allocation5 + $0x20] sm:$0xff]
    %v64 = vld [vmem:[#allocation5 + $0x28] sm:$0xff]
    %v65 = vld [vmem:[#allocation5 + $0x30] sm:$0xff]
    %v66 = vld [vmem:[#allocation5 + $0x38] sm:$0xff]
    %v67 = vld [vmem:[#allocation5 + $0x40] sm:$0xff]
    %v68 = vld [vmem:[#allocation5 + $0x48] sm:$0xff]
    %v69 = vld [vmem:[#allocation5 + $0x50] sm:$0xff]
    %v70 = vld [vmem:[#allocation5 + $0x58] sm:$0xff]
    %v71 = vld [vmem:[#allocation5 + $0x60] sm:$0xff]
    %v72 = vld [vmem:[#allocation5 + $0x68] sm:$0xff]
    %v73 = vld [vmem:[#allocation5 + $0x70] sm:$0xff]
    %v74 = vld [vmem:[#allocation5 + $0x78] sm:$0xff]
    %v75 = vld [vmem:[#allocation5 + $0x80] sm:$0xff]
    %v76 = vld [vmem:[#allocation5 + $0x88] sm:$0xff]
    %v77 = vld [vmem:[#allocation5 + $0x90] sm:$0xff]
    %v78 = vld [vmem:[#allocation5 + $0x98] sm:$0xff]
    %v79 = vld [vmem:[#allocation5 + $0xa0] sm:$0xff]
    %v80 = vld [vmem:[#allocation5 + $0xa8] sm:$0xff]
    %v81 = vld [vmem:[#allocation5 + $0xb0] sm:$0xff]
    %v82 = vld [vmem:[#allocation5 + $0xb8] sm:$0xff]
    %v83 = vld [vmem:[#allocation5 + $0xc0] sm:$0xff]
    %v84 = vld [vmem:[#allocation5 + $0xc8] sm:$0xff]
    %v85 = vld [vmem:[#allocation5 + $0xd0] sm:$0xff]
    %v86 = vld [vmem:[#allocation5 + $0xd8] sm:$0xff]
    %v87 = vld [vmem:[#allocation5 + $0xe0] sm:$0xff]
    %v88 = vld [vmem:[#allocation5 + $0xe8] sm:$0xff]
    %v89 = vld [vmem:[#allocation5 + $0xf0] sm:$0xff]
    %v90 = vld [vmem:[#allocation5 + $0xf8] sm:$0xff]
    %v91 = vld [vmem:[#allocation5 + $0x100] sm:$0xff]
    %v92 = vld [vmem:[#allocation5 + $0x108] sm:$0xff]
    %v93 = vld [vmem:[#allocation5 + $0x110] sm:$0xff]
    %v94 = vld [vmem:[#allocation5 + $0x118] sm:$0xff]
    %v95 = vld [vmem:[#allocation5 + $0x120] sm:$0xff]
    %v96 = vld [vmem:[#allocation5 + $0x128] sm:$0xff]
    %v97 = vld [vmem:[#allocation5 + $0x130] sm:$0xff]
    %v98 = vld [vmem:[#allocation5 + $0x138] sm:$0xff]
    %v99 = vld [vmem:[#allocation5 + $0x140] sm:$0xff]
    %v100 = vld [vmem:[#allocation5 + $0x148] sm:$0xff]
    %v101 = vld [vmem:[#allocation5 + $0x150] sm:$0xff]
    %v102 = vld [vmem:[#allocation5 + $0x158] sm:$0xff]
    %v103 = vld [vmem:[#allocation5 + $0x160] sm:$0xff]
    %v104 = vld [vmem:[#allocation5 + $0x168] sm:$0xff]
    %v105 = vld [vmem:[#allocation5 + $0x170] sm:$0xff]
    %v106 = vld [vmem:[#allocation5 + $0x178] sm:$0xff]
    %v107 = vld [vmem:[#allocation5 + $0x180] sm:$0xff]
    %v108 = vld [vmem:[#allocation5 + $0x188] sm:$0xff]
    %v109 = vld [vmem:[#allocation5 + $0x190] sm:$0xff]
    %v110 = vld [vmem:[#allocation5 + $0x198] sm:$0xff]
    %v111 = vld [vmem:[#allocation5 + $0x1a0] sm:$0xff]
    %v112 = vld [vmem:[#allocation5 + $0x1a8] sm:$0xff]
    %v113 = vld [vmem:[#allocation5 + $0x1b0] sm:$0xff]
    %v114 = vld [vmem:[#allocation5 + $0x1b8] sm:$0xff]
    %v115 = vld [vmem:[#allocation5 + $0x1c0] sm:$0xff]
    %v116 = vld [vmem:[#allocation5 + $0x1c8] sm:$0xff]
    %v117 = vld [vmem:[#allocation5 + $0x1d0] sm:$0xff]
    %v118 = vld [vmem:[#allocation5 + $0x1d8] sm:$0xff]
    %v119 = vld [vmem:[#allocation5 + $0x1e0] sm:$0xff]
    %v120 = vld [vmem:[#allocation5 + $0x1e8] sm:$0xff]
    %v121 = vld [vmem:[#allocation5 + $0x1f0] sm:$0xff]
    %v122 = vld [vmem:[#allocation5 + $0x1f8] sm:$0xff]
    %v123 = vld [vmem:[#allocation7] sm:$0xf]
    %v125 = vperm.slane %v123, 0
    %v126 = vperm.slane %v123, 1
    %v127 = vperm.slane %v123, 2
    %v128 = vperm.slane %v123, 3
    %133 = vmatpush.msra.mxu0 %v119
    %134 = vmatpush.msra.mxu0 %v115
    %135 = vmatpush.msra.mxu0 %v111
    %136 = vmatpush.msra.mxu0 %v107
    %137 = vmatpush.msra.mxu0 %v103
    %138 = vmatpush.msra.mxu0 %v99
    %139 = vmatpush.msra.mxu0 %v95
    %140 = vmatpush.msra.mxu0 %v91
    %141 = vmatpush.msra.mxu0 %v87
    %142 = vmatpush.msra.mxu0 %v83
    %143 = vmatpush.msra.mxu0 %v79
    %144 = vmatpush.msra.mxu0 %v75
    %145 = vmatpush.msra.mxu0 %v71
    %146 = vmatpush.msra.mxu0 %v67
    %147 = vmatpush.msra.mxu0 %v63
    %148 = vmatpush.msra.mxu0 %v59
    %149 = vmatmul.f32.gmra.mxu0 %v58
    %v150 = vpop.f32.mrf.mxu0
    %v151 = vadd.f32 %v125, %v150
    %152 = vdwg.mxu0
    %153 = vmatpush.msra.mxu0 %v120
    %154 = vmatpush.msra.mxu0 %v116
    %155 = vmatpush.msra.mxu0 %v112
    %156 = vmatpush.msra.mxu0 %v108
    %157 = vmatpush.msra.mxu0 %v104
    %158 = vmatpush.msra.mxu0 %v100
    %159 = vmatpush.msra.mxu0 %v96
    %160 = vmatpush.msra.mxu0 %v92
    %161 = vmatpush.msra.mxu0 %v88
    %162 = vmatpush.msra.mxu0 %v84
    %163 = vmatpush.msra.mxu0 %v80
    %164 = vmatpush.msra.mxu0 %v76
    %165 = vmatpush.msra.mxu0 %v72
    %166 = vmatpush.msra.mxu0 %v68
    %167 = vmatpush.msra.mxu0 %v64
    %168 = vmatpush.msra.mxu0 %v60
    %169 = vmatmul.f32.gmra.mxu0 %v58
    %v170 = vpop.f32.mrf.mxu0
    %v171 = vadd.f32 %v126, %v170
    %172 = vdwg.mxu0
    %173 = vmatpush.msra.mxu0 %v121
    %174 = vmatpush.msra.mxu0 %v117
    %175 = vmatpush.msra.mxu0 %v113
    %176 = vmatpush.msra.mxu0 %v109
    %177 = vmatpush.msra.mxu0 %v105
    %178 = vmatpush.msra.mxu0 %v101
    %179 = vmatpush.msra.mxu0 %v97
    %180 = vmatpush.msra.mxu0 %v93
    %181 = vmatpush.msra.mxu0 %v89
    %182 = vmatpush.msra.mxu0 %v85
    %183 = vmatpush.msra.mxu0 %v81
    %184 = vmatpush.msra.mxu0 %v77
    %185 = vmatpush.msra.mxu0 %v73
    %186 = vmatpush.msra.mxu0 %v69
    %187 = vmatpush.msra.mxu0 %v65
    %188 = vmatpush.msra.mxu0 %v61
    %189 = vmatmul.f32.gmra.mxu0 %v58
    %v190 = vpop.f32.mrf.mxu0
    %v191 = vadd.f32 %v127, %v190
    %192 = vdwg.mxu0
    %193 = vmatpush.msra.mxu0 %v122
    %194 = vmatpush.msra.mxu0 %v118
    %195 = vmatpush.msra.mxu0 %v114
    %196 = vmatpush.msra.mxu0 %v110
    %197 = vmatpush.msra.mxu0 %v106
    %198 = vmatpush.msra.mxu0 %v102
    %199 = vmatpush.msra.mxu0 %v98
    %200 = vmatpush.msra.mxu0 %v94
    %201 = vmatpush.msra.mxu0 %v90
    %202 = vmatpush.msra.mxu0 %v86
    %203 = vmatpush.msra.mxu0 %v82
    %204 = vmatpush.msra.mxu0 %v78
    %205 = vmatpush.msra.mxu0 %v74
    %206 = vmatpush.msra.mxu0 %v70
    %207 = vmatpush.msra.mxu0 %v66
    %208 = vmatpush.msra.mxu0 %v62
    %209 = vmatmul.f32.gmra.mxu0 %v58
    %v210 = vpop.f32.mrf.mxu0
    %v211 = vadd.f32 %v128, %v210
    %212 = vdwg.mxu0
    %v217 = vrot.slane %v171, 6
    %v218 = vrot.slane %v191, 4
    %v219 = vrot.slane %v211, 2
    %vm220 = vcmask 1041408
    %v221 = vsel %vm220, %v151, %v217
    %vm222 = vcmask 1045508
    %v223 = vsel %vm222, %v218, %v219
    %vm224 = vcmask 1043456
    %v225 = vsel %vm224, %v221, %v223
    %227 = vst [vmem:[#allocation8] sm:$0xff] %v225
    // Predicated region
    $region26: #{tpu_custom_call.1} parent=1 // pred_check
      _
    $region27: #{tpu_custom_call.1} parent=1 // pred_check_branch
      %229 = sbr.rel (0) target = $region29
    $region28: #{tpu_custom_call.1} parent=1 // pred_region
      %231 = vsyncadd [#allocation4], 0
      %s233 = sshll.u32 [#allocation8], 4
      %s234 = int_to_ptr.vmem [resolvable:$true] %s233
      %s235 = sshll.u32 %s3, 4
      %s236 = int_to_ptr.hbm [resolvable:$true] %s235
      %238 = dma.vmem_to_hbm [thread:$0]  %s234, 128, %s236, [#allocation4]
    $region29: #{tpu_custom_call.1} parent=1 // pred_fallthru
      _
    // Predicated region
    $region30: #{tpu_custom_call.1} parent=1 // pred_check
      _
    $region31: #{tpu_custom_call.1} parent=1 // pred_check_branch
      %240 = sbr.rel (0) target = $region33
    $region32: #{tpu_custom_call.1} parent=1 // pred_region
      %242 = dma.done [#allocation4], 128
    $region33: #{tpu_custom_call.1} parent=1 // pred_fallthru
      _
    %243 = vsyncpa [#allocation3], 1
    %244 = vsyncpa [#allocation6], 1
    %245 = vsyncpa [#allocation4], 1

</llo_original>
